<compile_context>
chip_gen: v6e
topology: v6e:2x2x1
jax: 0.10.0
libtpu: 0.0.40
codegen_flags: <defaults>
</compile_context>

<pallas_src>
import functools

import jax
import jax.numpy as jnp
import numpy as np
from jax.experimental import pallas as pl
from jax.experimental.pallas import tpu as pltpu


# --------------------------------------------------------------------------- #
# Helpers
# --------------------------------------------------------------------------- #
def _cdiv(a, b):
    return -(-a // b)


def _round_up(x, m):
    return ((x + m - 1) // m) * m


def _sublane_align(dtype):
    # Packed sublane multiple: 8 for 32-bit, 16 for bf16, 32 for int8/fp8.
    return max(8, 32 // jnp.dtype(dtype).itemsize)


def _select_tile(dim, want, align):
    """Pick a tile size (multiple of `align`) for `dim`, targeting ~`want`.

    Padding per block is bounded by (align - 1) elements instead of (almost) a
    whole tile, e.g. dim=300, want=512 -> tile=304, not 512.
    Returns (tile, grid, padded_dim) with grid * tile == padded_dim >= dim.
    """
    want = max(int(want), align)
    g = max(1, _cdiv(dim, want))
    t = _round_up(_cdiv(dim, g), align)
    g = _cdiv(dim, t)
    return t, g, t * g


# --------------------------------------------------------------------------- #
# Kernels
# --------------------------------------------------------------------------- #
def _matmul_kernel_single(x_ref, w_ref, o_ref):
    # Whole K reduction in one grid step: write the MXU result straight out.
    o_ref[...] = jnp.dot(
        x_ref[...], w_ref[...], preferred_element_type=jnp.float32
    ).astype(o_ref.dtype)


def _matmul_kernel_acc_inplace(x_ref, w_ref, o_ref):
    # f32 output: accumulate directly into the resident output block
    # (out BlockSpec ignores k), so no VMEM scratch and no final copy/astype.
    @pl.when(pl.program_id(2) == 0)
    def _():
        o_ref[...] = jnp.zeros_like(o_ref)

    o_ref[...] += jnp.dot(
        x_ref[...], w_ref[...], preferred_element_type=jnp.float32
    )


def _matmul_kernel_acc_scratch(x_ref, w_ref, o_ref, acc_ref):
    # Non-f32 output: keep an f32 accumulator scratch, cast once at the end.
    @pl.when(pl.program_id(2) == 0)
    def _():
        acc_ref[...] = jnp.zeros_like(acc_ref)

    acc_ref[...] += jnp.dot(
        x_ref[...], w_ref[...], preferred_element_type=jnp.float32
    )

    @pl.when(pl.program_id(2) == pl.num_programs(2) - 1)
    def _():
        o_ref[...] = acc_ref[...].astype(o_ref.dtype)


# --------------------------------------------------------------------------- #
# Weight preprocessing (done ONCE per weight, not per forward call)
# --------------------------------------------------------------------------- #
def prepare_weights(w, *, tn=512, tk=1024, compute_dtype=None):
    """Pad W to hardware-aligned (Kp, Np) and optionally cast, once."""
    K, N = w.shape
    tk_e, _, Kp = _select_tile(K, tk, 128)  # 128 covers lane + packed sublane reqs
    tn_e, _, Np = _select_tile(N, tn, 128)
    wp = w
    if (Kp, Np) != (K, N):
        wp = jnp.pad(wp, ((0, Kp - K), (0, Np - N)))
    if compute_dtype is not None and wp.dtype != jnp.dtype(compute_dtype):
        wp = wp.astype(compute_dtype)
    meta = dict(n_out=N, k_in=K, tn_e=tn_e, tk_e=tk_e)
    return wp, meta


# --------------------------------------------------------------------------- #
# Forward pass
# --------------------------------------------------------------------------- #
@functools.partial(
    jax.jit,
    static_argnames=("n_out", "k_in", "tn_e", "tk_e", "tm", "compute_dtype",
                     "out_dtype"),
)
def lineal_forward_prepared(x, w_prepared, *, n_out, k_in, tn_e, tk_e, tm=512,
                            compute_dtype=None, out_dtype=jnp.float32):
    M, K = x.shape
    assert K == k_in, f"inner dims mismatch: {K} vs {k_in}"
    Kp, Np = w_prepared.shape
    assert Kp % tk_e == 0 and Np % tn_e == 0
    gk = Kp // tk_e
    gn = Np // tn_e

    # Compute dtype of the MXU inputs (accumulation is always f32).
    xdt = jnp.dtype(compute_dtype) if compute_dtype is not None else x.dtype
    align_m = _sublane_align(xdt)
    tm_e, gm, Mp = _select_tile(M, tm, align_m)

    # Megacore guard: make sure at least one 'parallel' axis has >= 2 blocks so
    # both TensorCores on v7x get work. Only split when alignment allows it
    # without changing the padded extents.
    if gm == 1 and gn == 1:
        if tn_e % 256 == 0:
            tn_e //= 2
            gn = Np // tn_e
        elif tm_e % (2 * align_m) == 0:
            tm_e //= 2
            gm = Mp // tm_e

    # Pad / cast activations (weights were preprocessed once, outside).
    if (Mp, Kp) != (M, K):
        x = jnp.pad(x, ((0, Mp - M), (0, Kp - K)))
    if compute_dtype is not None and x.dtype != jnp.dtype(compute_dtype):
        x = x.astype(compute_dtype)

    out_dtype = jnp.dtype(out_dtype)

    # VMEM budget: actual double-buffered footprint, capped at 48 MiB
    # (fits v5e/v6e easily; leaves pipelining headroom on v7x's 64 MiB/TC).
    k_block = Kp if gk == 1 else tk_e
    vmem_needed = (
        2 * (tm_e * k_block + k_block * tn_e) * jnp.dtype(xdt).itemsize
        + 2 * tm_e * tn_e * out_dtype.itemsize
        + tm_e * tn_e * 4  # possible f32 scratch
    )
    vmem_limit = int(min(max(2 * vmem_needed, 32 * 1024 * 1024),
                         48 * 1024 * 1024))

    cost = pl.CostEstimate(
        flops=2 * M * n_out * k_in,
        transcendentals=0,
        bytes_accessed=(
            jnp.dtype(xdt).itemsize * (M * k_in + k_in * n_out)
            + out_dtype.itemsize * M * n_out
        ),
    )

    if gk == 1:
        # Single K step: no accumulator, 2-D parallel grid.
        out = pl.pallas_call(
            _matmul_kernel_single,
            out_shape=jax.ShapeDtypeStruct((Mp, Np), out_dtype),
            grid_spec=pltpu.PrefetchScalarGridSpec(
                num_scalar_prefetch=0,
                grid=(gm, gn),
                in_specs=[
                    pl.BlockSpec((tm_e, Kp), lambda i, j: (i, 0)),
                    pl.BlockSpec((Kp, tn_e), lambda i, j: (0, j)),
                ],
                out_specs=pl.BlockSpec((tm_e, tn_e), lambda i, j: (i, j)),
            ),
            compiler_params=pltpu.CompilerParams(
                dimension_semantics=("parallel", "parallel"),
                vmem_limit_bytes=vmem_limit,
            ),
            cost_estimate=cost,
        )(x, w_prepared)
    else:
        # Reduction axis last; output block resident across k.
        # NOTE: if profiling ever shows exposed DMA between k-strips, add
        # pipeline_mode=pl.Buffered(3) to the W BlockSpec.
        if out_dtype == jnp.float32:
            kernel, scratch = _matmul_kernel_acc_inplace, []
        else:
            kernel, scratch = (_matmul_kernel_acc_scratch,
                               [pltpu.VMEM((tm_e, tn_e), jnp.float32)])
        out = pl.pallas_call(
            kernel,
            out_shape=jax.ShapeDtypeStruct((Mp, Np), out_dtype),
            grid_spec=pltpu.PrefetchScalarGridSpec(
                num_scalar_prefetch=0,
                grid=(gm, gn, gk),
                in_specs=[
                    pl.BlockSpec((tm_e, tk_e), lambda i, j, k: (i, k)),
                    pl.BlockSpec((tk_e, tn_e), lambda i, j, k: (k, j)),
                ],
                out_specs=pl.BlockSpec((tm_e, tn_e), lambda i, j, k: (i, j)),
                scratch_shapes=scratch,
            ),
            compiler_params=pltpu.CompilerParams(
                dimension_semantics=("parallel", "parallel", "arbitrary"),
                vmem_limit_bytes=vmem_limit,
            ),
            cost_estimate=cost,
        )(x, w_prepared)

    if (Mp, Np) != (M, n_out):
        out = out[:M, :n_out]
    return out


def lineal_forward(x, w, *, tm=512, tn=512, tk=1024, compute_dtype=None):
    """Standalone convenience wrapper: y = x @ w (pads/casts W per call)."""
    out_dtype = jnp.result_type(x.dtype, w.dtype)
    wp, meta = prepare_weights(w, tn=tn, tk=tk, compute_dtype=compute_dtype)
    return lineal_forward_prepared(
        x, wp, tm=tm, compute_dtype=compute_dtype, out_dtype=out_dtype, **meta
    )


# --------------------------------------------------------------------------- #
# Module wrapper
# --------------------------------------------------------------------------- #
class LinealPallas:
    """JAX/Pallas equivalent of NN.py::Lineal (forward pass only).

    backward/update/zero_gradient are no-ops in the reference module, so only
    forward is implemented.

    On v6e/v7x, pass compute_dtype=jnp.bfloat16 for ~2-3x MXU throughput and
    half the HBM traffic (f32 accumulation is kept); default is f32 to match
    np.dot numerics exactly.
    """

    def __init__(self, input_size, output_size, seed=0, *, compute_dtype=None,
                 tm=512, tn=512, tk=1024):
        self._INPUT_SIZE = input_size
        self._OUTPUT_SIZE = output_size
        # Deterministic init mirroring np.random.randn(in, out) / sqrt(in).
        key = jax.random.PRNGKey(seed)
        self._W = (
            jax.random.normal(key, (input_size, output_size), dtype=jnp.float32)
            / jnp.sqrt(jnp.float32(input_size))
        )
        self._compute_dtype = compute_dtype
        self._tm = tm
        # Pre-pad / pre-cast the (static) weight exactly once; forward never
        # touches W in HBM just for layout/casting again.
        self._W_prepared, self._meta = prepare_weights(
            self._W, tn=tn, tk=tk, compute_dtype=compute_dtype
        )

    def forward(self, x):
        return lineal_forward_prepared(
            x, self._W_prepared, tm=self._tm,
            compute_dtype=self._compute_dtype, out_dtype=jnp.float32,
            **self._meta,
        )


# --------------------------------------------------------------------------- #
# Self-test
# --------------------------------------------------------------------------- #
if __name__ == "__main__":
    key = jax.random.PRNGKey(0)
    kx1, kx2, kw2 = jax.random.split(key, 3)

    # 1) Small shapes consistent with the module; intentionally NOT multiples of
    #    (8, 128) to exercise the pad-and-slice + single-K-step path.
    batch, input_size, output_size = 8, 96, 80
    x1 = jax.random.normal(kx1, (batch, input_size), dtype=jnp.float32)
    layer = LinealPallas(input_size, output_size, seed=0)
    out1 = jax.block_until_ready(layer.forward(x1))
    ref1 = x1 @ layer._W
    np.testing.assert_allclose(np.asarray(out1), np.asarray(ref1),
                               rtol=1e-5, atol=1e-5)

    # 2) Exercise the K-accumulation (in-place into the resident f32 output
    #    block) path by forcing small tiles on a slightly larger problem.
    M2, K2, N2 = 16, 256, 192
    x2 = jax.random.normal(kx2, (M2, K2), dtype=jnp.float32)
    w2 = jax.random.normal(kw2, (K2, N2), dtype=jnp.float32)
    out2 = jax.block_until_ready(
        lineal_forward(x2, w2, tm=16, tn=128, tk=128)
    )
    ref2 = x2 @ w2
    np.testing.assert_allclose(np.asarray(out2), np.asarray(ref2),
                               rtol=1e-5, atol=1e-5)

    print("KERNEL_OK")
</pallas_src>

<mosaic_0001>
module attributes {stable_mosaic.version = 11 : i64} {
  func.func @_matmul_kernel_single(%arg0: i32, %arg1: i32, %arg2: memref<8x128xf32, #tpu.memory_space<vmem>>, %arg3: memref<128x128xf32, #tpu.memory_space<vmem>>, %arg4: memref<8x128xf32, #tpu.memory_space<vmem>>) attributes {dimension_semantics = [#tpu.dimension_semantics<parallel>, #tpu.dimension_semantics<parallel>], iteration_bounds = array<i64: 1, 1>, scalar_prefetch = 0 : i64, scratch_operands = 0 : i64, tpu.core_type = #tpu.core_type<tc>, window_params = [{transform_indices = @transform_0, window_bounds = array<i64: 8, 128>}, {transform_indices = @transform_1, window_bounds = array<i64: 128, 128>}, {transform_indices = @transform_2, window_bounds = array<i64: 8, 128>}]} {
    %c0 = arith.constant 0 : index
    %c0_0 = arith.constant 0 : index
    %0 = vector.load %arg2[%c0, %c0_0] : memref<8x128xf32, #tpu.memory_space<vmem>>, vector<8x128xf32>
    %c0_1 = arith.constant 0 : index
    %c0_2 = arith.constant 0 : index
    %1 = vector.load %arg3[%c0_1, %c0_2] : memref<128x128xf32, #tpu.memory_space<vmem>>, vector<128x128xf32>
    %cst = arith.constant dense<0.000000e+00> : vector<8x128xf32>
    %2 = tpu.matmul %0, %1, %cst {dimension_numbers = #tpu.dot_dimension_numbers<[1], [0], [0], [1], [0, 0, 1, 1], [], []>} : vector<8x128xf32>, vector<128x128xf32>, vector<8x128xf32> -> vector<8x128xf32>
    %c0_3 = arith.constant 0 : index
    %c0_4 = arith.constant 0 : index
    %3 = vector.load %arg4[%c0_3, %c0_4] : memref<8x128xf32, #tpu.memory_space<vmem>>, vector<8x128xf32>
    tpu.vector_store %arg4[%c0_3, %c0_4], %2 {strides = array<i32>} : memref<8x128xf32, #tpu.memory_space<vmem>>, vector<8x128xf32>,
    return
  }
  func.func @transform_0(%arg0: i32, %arg1: i32) -> (i32, i32) {
    %c0_i32 = arith.constant 0 : i32
    %c0_i32_0 = arith.constant 0 : i32
    return %arg0, %c0_i32 : i32, i32
  }
  func.func @transform_1(%arg0: i32, %arg1: i32) -> (i32, i32) {
    %c0_i32 = arith.constant 0 : i32
    %c0_i32_0 = arith.constant 0 : i32
    return %c0_i32, %arg1 : i32, i32
  }
  func.func @transform_2(%arg0: i32, %arg1: i32) -> (i32, i32) {
    %c0_i32 = arith.constant 0 : i32
    return %arg0, %arg1 : i32, i32
  }
}

</mosaic_0001>

<llo_original>
// kernel: lineal_forward_prepared.1
$region0: #{lineal_forward_prepared.1}
  #allocation0 [shape = 'u32[]', space=smem, size = 0x4, offset = 0x4, fixed_abs, tag = 'smem constant byte address 0x4 - core index']
  #allocation1 [shape = 'u32[144,128]{1,0:T(1,128)}', space=vmem, size = 0x12000, scoped, tag = 'internal scratch']
  %s0 = inlined_call_operand.vmem [shape: f32[8,128], index: 0, kind: input, shape index: {}]
  %s1 = inlined_call_operand.hbm [shape: f32[128,128], index: 1, kind: input, shape index: {}]
  %s2 = inlined_call_operand.hbm [shape: f32[8,128], index: 2, kind: output, shape index: {}]
  %s3 = sld [smem:[#allocation0]]
  $region22: #{lineal_forward_prepared.1} parent=0
    _
  %s5 = ssub.s32 1, %s3
  %s6 = scalar_select 0, %s5, %s3
  $region1: #{lineal_forward_prepared.1} parent=0
    #allocation2 [shape = 'u8[65536]{0}', space=vmem, size = 0x10000, scoped, tag = 'input window, operand 1, single buffered']
    #allocation3 [shape = 's32[1]{0}', space=sflag, size = 0x4, scoped, tag = 'scoped memory for lineal_forward_prepared.1']
    #allocation4 [shape = 's32[1]{0}', space=sflag, size = 0x4, scoped, tag = 'scoped memory for lineal_forward_prepared.1']
    #allocation5 [shape = 'u8[4096]{0}', space=vmem, size = 0x1000, scoped, tag = 'output window, operand 0, single buffered']
    %7 = vsyncpa [#allocation3], 0
    %8 = vsyncpa [#allocation4], 0
    // Predicated region
    $region2: #{lineal_forward_prepared.1} parent=1 // pred_check
      _
    $region3: #{lineal_forward_prepared.1} parent=1 // pred_check_branch
      %10 = sbr.rel (0) target = $region5
    $region4: #{lineal_forward_prepared.1} parent=1 // pred_region
      _
    $region5: #{lineal_forward_prepared.1} parent=1 // pred_fallthru
      _
    // Predicated region
    $region6: #{lineal_forward_prepared.1} parent=1 // pred_check
      _
    $region7: #{lineal_forward_prepared.1} parent=1 // pred_check_branch
      %12 = sbr.rel (0) target = $region9
    $region8: #{lineal_forward_prepared.1} parent=1 // pred_region
      %s14 = ssub.s32 2048, 2048
      %15 = vsyncadd [#allocation3], %s14
      %s16 = sshll.u32 [#allocation2], 4
      %s17 = int_to_ptr.vmem [resolvable:$true] %s16
      %22 = dma.hbm_to_vmem [thread:$0]  %s1, 2048, %s17, [#allocation3], 128, 128, 8
    $region9: #{lineal_forward_prepared.1} parent=1 // pred_fallthru
      _
    // Predicated region
    $region10: #{lineal_forward_prepared.1} parent=1 // pred_check
      _
    $region11: #{lineal_forward_prepared.1} parent=1 // pred_check_branch
      %24 = sbr.rel (0) target = $region13
    $region12: #{lineal_forward_prepared.1} parent=1 // pred_region
      %25 = dma.done [#allocation3], 2048
    $region13: #{lineal_forward_prepared.1} parent=1 // pred_fallthru
      _
    %v26 = vld [vmem:[%s0] sm:$0xff]
    %v27 = vld [vmem:[#allocation2] sm:$0xff]
    %v28 = vld [vmem:[#allocation2 + $0x8] sm:$0xff]
    %v29 = vld [vmem:[#allocation2 + $0x10] sm:$0xff]
    %v30 = vld [vmem:[#allocation2 + $0x18] sm:$0xff]
    %v31 = vld [vmem:[#allocation2 + $0x20] sm:$0xff]
    %v32 = vld [vmem:[#allocation2 + $0x28] sm:$0xff]
    %v33 = vld [vmem:[#allocation2 + $0x30] sm:$0xff]
    %v34 = vld [vmem:[#allocation2 + $0x38] sm:$0xff]
    %v35 = vld [vmem:[#allocation2 + $0x40] sm:$0xff]
    %v36 = vld [vmem:[#allocation2 + $0x48] sm:$0xff]
    %v37 = vld [vmem:[#allocation2 + $0x50] sm:$0xff]
    %v38 = vld [vmem:[#allocation2 + $0x58] sm:$0xff]
    %v39 = vld [vmem:[#allocation2 + $0x60] sm:$0xff]
    %v40 = vld [vmem:[#allocation2 + $0x68] sm:$0xff]
    %v41 = vld [vmem:[#allocation2 + $0x70] sm:$0xff]
    %v42 = vld [vmem:[#allocation2 + $0x78] sm:$0xff]
    %43 = vmatprep.subr.mxu0 0.0
    %44 = vmatpush1.msra.mxu0 %v42
    %45 = vmatprep.subr.mxu0 0.0
    %46 = vmatpush1.msra.mxu0 %v41
    %47 = vmatprep.subr.mxu0 0.0
    %48 = vmatpush1.msra.mxu0 %v40
    %49 = vmatprep.subr.mxu0 0.0
    %50 = vmatpush1.msra.mxu0 %v39
    %51 = vmatprep.subr.mxu0 0.0
    %52 = vmatpush1.msra.mxu0 %v38
    %53 = vmatprep.subr.mxu0 0.0
    %54 = vmatpush1.msra.mxu0 %v37
    %55 = vmatprep.subr.mxu0 0.0
    %56 = vmatpush1.msra.mxu0 %v36
    %57 = vmatprep.subr.mxu0 0.0
    %58 = vmatpush1.msra.mxu0 %v35
    %59 = vmatprep.subr.mxu0 0.0
    %60 = vmatpush1.msra.mxu0 %v34
    %61 = vmatprep.subr.mxu0 0.0
    %62 = vmatpush1.msra.mxu0 %v33
    %63 = vmatprep.subr.mxu0 0.0
    %64 = vmatpush1.msra.mxu0 %v32
    %65 = vmatprep.subr.mxu0 0.0
    %66 = vmatpush1.msra.mxu0 %v31
    %67 = vmatprep.subr.mxu0 0.0
    %68 = vmatpush1.msra.mxu0 %v30
    %69 = vmatprep.subr.mxu0 0.0
    %70 = vmatpush1.msra.mxu0 %v29
    %71 = vmatprep.subr.mxu0 0.0
    %72 = vmatpush1.msra.mxu0 %v28
    %73 = vmatprep.subr.mxu0 0.0
    %74 = vmatpush1.msra.mxu0 %v27
    %75 = vmatprep.subr.mxu0 0.0
    %76 = vmatpush2.msra.mxu0 0.0
    %77 = vmatprep.subr.mxu0 0.0
    %78 = vmatpush2.msra.mxu0 0.0
    %79 = vmatprep.subr.mxu0 0.0
    %80 = vmatpush2.msra.mxu0 0.0
    %81 = vmatprep.subr.mxu0 0.0
    %82 = vmatpush2.msra.mxu0 0.0
    %83 = vmatprep.subr.mxu0 0.0
    %84 = vmatpush2.msra.mxu0 0.0
    %85 = vmatprep.subr.mxu0 0.0
    %86 = vmatpush2.msra.mxu0 0.0
    %87 = vmatprep.subr.mxu0 0.0
    %88 = vmatpush2.msra.mxu0 0.0
    %89 = vmatprep.subr.mxu0 0.0
    %90 = vmatpush2.msra.mxu0 0.0
    %91 = vmatprep.subr.mxu0 0.0
    %92 = vmatpush2.msra.mxu0 0.0
    %93 = vmatprep.subr.mxu0 0.0
    %94 = vmatpush2.msra.mxu0 0.0
    %95 = vmatprep.subr.mxu0 0.0
    %96 = vmatpush2.msra.mxu0 0.0
    %97 = vmatprep.subr.mxu0 0.0
    %98 = vmatpush2.msra.mxu0 0.0
    %99 = vmatprep.subr.mxu0 0.0
    %100 = vmatpush2.msra.mxu0 0.0
    %101 = vmatprep.subr.mxu0 0.0
    %102 = vmatpush2.msra.mxu0 0.0
    %103 = vmatprep.subr.mxu0 0.0
    %104 = vmatpush2.msra.mxu0 0.0
    %105 = vmatprep.subr.mxu0 0.0
    %106 = vmatpush2.msra.mxu0 0.0
    %107 = vmatprep.mubr.f32.mxu0 0.0
    %108 = vmatmul.mubr.f32.gmra.mxu0 %v26
    %v109 = vpop.f32.mrf.mxu0
    %v110 = vadd.f32 0.0, %v109
    %v111 = vpop.f32.mrf.mxu0
    %112 = vdwg.mxu0
    %113 = vst [vmem:[#allocation5] sm:$0xff] %v110
    // Predicated region
    $region14: #{lineal_forward_prepared.1} parent=1 // pred_check
      _
    $region15: #{lineal_forward_prepared.1} parent=1 // pred_check_branch
      %115 = sbr.rel (0) target = $region17
    $region16: #{lineal_forward_prepared.1} parent=1 // pred_region
      %s117 = ssub.s32 128, 128
      %118 = vsyncadd [#allocation4], %s117
      %s120 = sshll.u32 [#allocation5], 4
      %s121 = int_to_ptr.vmem [resolvable:$true] %s120
      %123 = dma.vmem_to_hbm [thread:$0]  %s121, 128, %s2, [#allocation4]
    $region17: #{lineal_forward_prepared.1} parent=1 // pred_fallthru
      _
    // Predicated region
    $region18: #{lineal_forward_prepared.1} parent=1 // pred_check
      _
    $region19: #{lineal_forward_prepared.1} parent=1 // pred_check_branch
      %125 = sbr.rel (0) target = $region21
    $region20: #{lineal_forward_prepared.1} parent=1 // pred_region
      %126 = dma.done [#allocation4], 128
    $region21: #{lineal_forward_prepared.1} parent=1 // pred_fallthru
      _
    %127 = vsyncpa [#allocation3], 1
    %128 = vsyncpa [#allocation4], 1

</llo_original>
